<compile_context>
chip_gen: v7x
topology: tpu7x:2x2x1
jax: 0.10.0
libtpu: 0.0.40
codegen_flags: <defaults>
</compile_context>

<pallas_src>
import functools

import jax
import jax.numpy as jnp
from jax import lax
from jax.experimental import pallas as pl
from jax.experimental.pallas import tpu as pltpu


def _sublane_granule(dtype):
    """Sublane packing granule: 8 for 32-bit, 16 for 16-bit, 32 for 8-bit."""
    return max(8, 256 // (jnp.dtype(dtype).itemsize * 8))


def _pick_tile(dim, target, granule):
    """Largest tile <= target that divides dim and is a multiple of granule.

    Small dims use the full extent (a full-dim block is always layout-legal).
    """
    if dim <= max(target, granule):
        return dim
    t = (min(target, dim) // granule) * granule
    while t >= granule:
        if dim % t == 0:
            return t
        t -= granule
    # TODO(synk): for awkward dims switch to a cdiv grid + masked tail
    # (pl.when / BoundedSlice); fall back to a single full-dim block for now.
    return dim


# ---------------------------------------------------------------------------
# Flash-attention forward: output + per-row logsumexp, no O(L^2) HBM traffic.
# ---------------------------------------------------------------------------
def _flash_fwd_kernel(q_ref, k_ref, v_ref, o_ref, lse_ref,
                      m_sc, l_sc, acc_sc, *, inv_temperature):
    ki = pl.program_id(3)

    @pl.when(ki == 0)
    def _init():
        m_sc[...] = jnp.full(m_sc.shape, -jnp.inf, jnp.float32)
        l_sc[...] = jnp.zeros(l_sc.shape, jnp.float32)
        acc_sc[...] = jnp.zeros(acc_sc.shape, jnp.float32)

    # Scale q, not the [tq, tkv] scores tile: tq*Dk multiplies instead of
    # tq*tkv per kv step (the VALU slot is the likely binding unit).
    q = q_ref[...] * inv_temperature                 # stays in q's dtype
    k = k_ref[...]                                   # [tkv, Dk]
    v = v_ref[...]                                   # [tkv, Dv]

    # scores = q_scaled @ k^T -- contract last dims, no transpose materialized.
    s = lax.dot_general(q, k, dimension_numbers=(((1,), (1,)), ((), ())),
                        preferred_element_type=jnp.float32)   # [tq, tkv] f32

    m_prev = m_sc[...]
    m_new = jnp.maximum(m_prev, jnp.max(s, axis=-1, keepdims=True))
    alpha = jnp.exp(m_prev - m_new)

    # For bf16/f16 v, exponentiate directly in that dtype so no separate
    # f32->bf16 cast of the [tq, tkv] tile remains (bf16 EUP on v6e/v7x; on
    # v5e the compiler upcasts). f32 inputs keep exact f32 softmax math.
    p_dtype = jnp.float32 if v_ref.dtype == jnp.float32 else v_ref.dtype
    p = jnp.exp((s - m_new).astype(p_dtype))         # [tq, tkv]

    l_sc[...] = alpha * l_sc[...] + jnp.sum(p, axis=-1, keepdims=True,
                                            dtype=jnp.float32)
    acc_sc[...] = alpha * acc_sc[...] + jnp.dot(
        p, v, preferred_element_type=jnp.float32)
    m_sc[...] = m_new

    @pl.when(ki == pl.num_programs(3) - 1)
    def _finalize():
        # Approximate reciprocal (idle EUP slot) when output rounding hides
        # the few-bit error; exact divide for f32 outputs / parity tests.
        approx = o_ref.dtype != jnp.float32
        inv_l = pl.reciprocal(l_sc[...], approx=approx)
        o_ref[...] = (acc_sc[...] * inv_l).astype(o_ref.dtype)
        lse_ref[...] = m_sc[...] + jnp.log(l_sc[...])


def _flash_attention(q, k, v, inv_temperature, *, tq_target=512, tkv_target=256):
    B, H, Lq, Dk = q.shape
    Lk = k.shape[2]
    Dv = v.shape[3]

    # q tile: dtype sublane granule. kv tile: multiple of 128 (lane dim of the
    # scores tile; 128 also covers every dtype's sublane granule for K/V).
    tq = _pick_tile(Lq, tq_target, _sublane_granule(q.dtype))
    tkv = _pick_tile(Lk, tkv_target, 128)
    nq = Lq // tq
    nk = Lk // tkv

    kernel = functools.partial(_flash_fwd_kernel, inv_temperature=inv_temperature)

    grid_spec = pltpu.PrefetchScalarGridSpec(
        num_scalar_prefetch=0,
        grid=(B, H, nq, nk),
        in_specs=[
            pl.BlockSpec((None, None, tq, Dk), lambda b, h, qi, ki: (b, h, qi, 0)),
            pl.BlockSpec((None, None, tkv, Dk), lambda b, h, qi, ki: (b, h, ki, 0)),
            pl.BlockSpec((None, None, tkv, Dv), lambda b, h, qi, ki: (b, h, ki, 0)),
        ],
        out_specs=[
            pl.BlockSpec((None, None, tq, Dv), lambda b, h, qi, ki: (b, h, qi, 0)),
            pl.BlockSpec((None, None, tq, 1), lambda b, h, qi, ki: (b, h, qi, 0)),
        ],
        scratch_shapes=[
            pltpu.VMEM((tq, 1), jnp.float32),    # running max
            pltpu.VMEM((tq, 1), jnp.float32),    # running softmax denominator
            pltpu.VMEM((tq, Dv), jnp.float32),   # output accumulator
        ],
    )

    # K and V are re-streamed from HBM once per q tile (traffic ~ 1/tq).
    kv_bytes = nq * (k.size * k.dtype.itemsize + v.size * v.dtype.itemsize)
    cost = pl.CostEstimate(
        flops=2 * B * H * Lq * Lk * (Dk + Dv),
        transcendentals=B * H * Lq * Lk,
        bytes_accessed=(q.size * q.dtype.itemsize
                        + kv_bytes
                        + B * H * Lq * Dv * q.dtype.itemsize
                        + B * H * Lq * 4),
    )

    return pl.pallas_call(
        kernel,
        out_shape=(jax.ShapeDtypeStruct((B, H, Lq, Dv), q.dtype),
                   jax.ShapeDtypeStruct((B, H, Lq, 1), jnp.float32)),
        grid_spec=grid_spec,
        compiler_params=pltpu.CompilerParams(
            dimension_semantics=("parallel", "parallel", "parallel", "arbitrary")),
        cost_estimate=cost,
    )(q, k, v)


# ---------------------------------------------------------------------------
# Optional debug path: materialize the attention probabilities (the module's
# second return value). Tiled over BOTH q and kv so no full-Lk block is ever
# resident in VMEM (v7x-safe); normalization reuses the flash pass's lse.
# ---------------------------------------------------------------------------
def _attn_probs_kernel(q_ref, k_ref, lse_ref, attn_ref, *, inv_temperature):
    q = q_ref[...] * inv_temperature                 # [tq, Dk]
    s = lax.dot_general(q, k_ref[...],
                        dimension_numbers=(((1,), (1,)), ((), ())),
                        preferred_element_type=jnp.float32)   # [tq, tkv] f32
    attn_ref[...] = jnp.exp(s - lse_ref[...]).astype(attn_ref.dtype)


def _attention_probs(q, k, lse, inv_temperature, *, tq_target=256, tkv_target=512):
    B, H, Lq, Dk = q.shape
    Lk = k.shape[2]
    tq = _pick_tile(Lq, tq_target, _sublane_granule(q.dtype))
    tkv = _pick_tile(Lk, tkv_target, 128)   # lane dim of the output tile
    nq = Lq // tq
    nk = Lk // tkv

    kernel = functools.partial(_attn_probs_kernel, inv_temperature=inv_temperature)

    grid_spec = pltpu.PrefetchScalarGridSpec(
        num_scalar_prefetch=0,
        grid=(B, H, nq, nk),
        in_specs=[
            pl.BlockSpec((None, None, tq, Dk), lambda b, h, qi, ki: (b, h, qi, 0)),
            pl.BlockSpec((None, None, tkv, Dk), lambda b, h, qi, ki: (b, h, ki, 0)),
            pl.BlockSpec((None, None, tq, 1), lambda b, h, qi, ki: (b, h, qi, 0)),
        ],
        out_specs=pl.BlockSpec((None, None, tq, tkv),
                               lambda b, h, qi, ki: (b, h, qi, ki)),
    )

    return pl.pallas_call(
        kernel,
        out_shape=jax.ShapeDtypeStruct((B, H, Lq, Lk), q.dtype),
        grid_spec=grid_spec,
        compiler_params=pltpu.CompilerParams(
            dimension_semantics=("parallel", "parallel", "parallel", "parallel")),
    )(q, k, lse)


# ---------------------------------------------------------------------------
# Public wrapper matching ScaledDotProductAttention.forward (eval mode).
# ---------------------------------------------------------------------------
def scaled_dot_product_attention(q, k, v, temperature, mask=None,
                                 return_attn=False, cast_to_bf16=False):
    """Returns (output, attn).

    return_attn=False (default / hot path): the O(L^2) attention matrix is
    never materialized or written to HBM and attn is None.
    return_attn=True: a second tiled kernel reproduces the probabilities
    (module semantics) using the logsumexp computed by the flash pass.
    cast_to_bf16=True: cast f32 q/k/v to bf16 for the MXU matmuls (f32
    accumulation); big MXU win on v6e/v7x, small precision cost.
    """
    if mask is not None:
        # TODO(synk): mask support (masked_fill(mask == 0, -1e9)) not implemented.
        raise NotImplementedError("mask is not supported by this Pallas kernel")

    if cast_to_bf16 and q.dtype == jnp.float32:
        q = q.astype(jnp.bfloat16)
        k = k.astype(jnp.bfloat16)
        v = v.astype(jnp.bfloat16)

    inv_temperature = 1.0 / float(temperature)
    out, lse = _flash_attention(q, k, v, inv_temperature)
    attn = _attention_probs(q, k, lse, inv_temperature) if return_attn else None
    return out, attn


def _reference(q, k, v, temperature):
    scores = jnp.matmul(q / temperature, jnp.swapaxes(k, 2, 3))
    attn = jax.nn.softmax(scores, axis=-1)
    return jnp.matmul(attn, v), attn


if __name__ == "__main__":
    key = jax.random.PRNGKey(0)
    kq, kk, kv = jax.random.split(key, 3)

    B, H, L, D = 2, 2, 8, 32          # small shapes consistent with the module
    temperature = float(D) ** 0.5     # typical choice: sqrt(d_k)

    q = jax.random.normal(kq, (B, H, L, D), dtype=jnp.float32)
    k = jax.random.normal(kk, (B, H, L, D), dtype=jnp.float32)
    v = jax.random.normal(kv, (B, H, L, D), dtype=jnp.float32)

    # Full module semantics: (output, attn).
    out, attn = scaled_dot_product_attention(q, k, v, temperature,
                                             return_attn=True)
    out = jax.block_until_ready(out)
    attn = jax.block_until_ready(attn)

    # Hot path (default): output only, no O(L^2) writeback.
    out_fast, attn_none = scaled_dot_product_attention(q, k, v, temperature)
    out_fast = jax.block_until_ready(out_fast)
    assert attn_none is None

    ref_out, ref_attn = _reference(q, k, v, temperature)
    assert jnp.allclose(out, ref_out, atol=1e-5, rtol=1e-5)
    assert jnp.allclose(attn, ref_attn, atol=1e-5, rtol=1e-5)
    assert jnp.allclose(out_fast, ref_out, atol=1e-5, rtol=1e-5)

    print("KERNEL_OK")
</pallas_src>

<mosaic_0001>
module attributes {stable_mosaic.version = 11 : i64} {
  func.func @_flash_fwd_kernel(%arg0: i32, %arg1: i32, %arg2: i32, %arg3: i32, %arg4: memref<1x1x8x32xf32, #tpu.memory_space<vmem>>, %arg5: memref<1x1x8x32xf32, #tpu.memory_space<vmem>>, %arg6: memref<1x1x8x32xf32, #tpu.memory_space<vmem>>, %arg7: memref<1x1x8x32xf32, #tpu.memory_space<vmem>>, %arg8: memref<1x1x8x1xf32, #tpu.memory_space<vmem>>, %arg9: memref<8x1xf32, #tpu.memory_space<vmem>>, %arg10: memref<8x1xf32, #tpu.memory_space<vmem>>, %arg11: memref<8x32xf32, #tpu.memory_space<vmem>>) attributes {dimension_semantics = [#tpu.dimension_semantics<parallel>, #tpu.dimension_semantics<parallel>, #tpu.dimension_semantics<parallel>, #tpu.dimension_semantics<arbitrary>], iteration_bounds = array<i64: 2, 2, 1, 1>, scalar_prefetch = 0 : i64, scratch_operands = 3 : i64, tpu.core_type = #tpu.core_type<tc>, window_params = [{transform_indices = @transform_0, window_bounds = array<i64: 1, 1, 8, 32>}, {transform_indices = @transform_1, window_bounds = array<i64: 1, 1, 8, 32>}, {transform_indices = @transform_2, window_bounds = array<i64: 1, 1, 8, 32>}, {transform_indices = @transform_3, window_bounds = array<i64: 1, 1, 8, 32>}, {transform_indices = @transform_4, window_bounds = array<i64: 1, 1, 8, 1>}]} {
    %c0_i32 = arith.constant 0 : i32
    %0 = arith.cmpi eq, %arg3, %c0_i32 : i32
    %1 = arith.extui %0 : i1 to i32
    %c0_i32_0 = arith.constant 0 : i32
    %2 = arith.cmpi ne, %1, %c0_i32_0 : i32
    scf.if %2 {
      %cst_30 = arith.constant 0xFF800000 : f32
      %37 = vector.broadcast %cst_30 : f32 to vector<8x1xf32>
      %c0_31 = arith.constant 0 : index
      %c0_32 = arith.constant 0 : index
      %38 = vector.load %arg9[%c0_31, %c0_32] : memref<8x1xf32, #tpu.memory_space<vmem>>, vector<8x1xf32>
      tpu.vector_store %arg9[%c0_31, %c0_32], %37 {strides = array<i32>} : memref<8x1xf32, #tpu.memory_space<vmem>>, vector<8x1xf32>,
      %cst_33 = arith.constant 0.000000e+00 : f32
      %39 = vector.broadcast %cst_33 : f32 to vector<8x1xf32>
      %c0_34 = arith.constant 0 : index
      %c0_35 = arith.constant 0 : index
      %40 = vector.load %arg10[%c0_34, %c0_35] : memref<8x1xf32, #tpu.memory_space<vmem>>, vector<8x1xf32>
      tpu.vector_store %arg10[%c0_34, %c0_35], %39 {strides = array<i32>} : memref<8x1xf32, #tpu.memory_space<vmem>>, vector<8x1xf32>,
      %cst_36 = arith.constant 0.000000e+00 : f32
      %41 = vector.broadcast %cst_36 : f32 to vector<8x32xf32>
      %c0_37 = arith.constant 0 : index
      %c0_38 = arith.constant 0 : index
      %42 = vector.load %arg11[%c0_37, %c0_38] : memref<8x32xf32, #tpu.memory_space<vmem>>, vector<8x32xf32>
      tpu.vector_store %arg11[%c0_37, %c0_38], %41 {strides = array<i32>} : memref<8x32xf32, #tpu.memory_space<vmem>>, vector<8x32xf32>,
    } else {
    }
    %c0 = arith.constant 0 : index
    %c0_1 = arith.constant 0 : index
    %c0_2 = arith.constant 0 : index
    %c0_3 = arith.constant 0 : index
    %3 = vector.load %arg4[%c0, %c0_1, %c0_2, %c0_3] : memref<1x1x8x32xf32, #tpu.memory_space<vmem>>, vector<1x1x8x32xf32>
    %4 = vector.shape_cast %3 : vector<1x1x8x32xf32> to vector<8x32xf32>
    %cst = arith.constant 0.176776692 : f32
    %5 = vector.broadcast %cst : f32 to vector<8x32xf32>
    %6 = arith.mulf %4, %5 : vector<8x32xf32>
    %c0_4 = arith.constant 0 : index
    %c0_5 = arith.constant 0 : index
    %c0_6 = arith.constant 0 : index
    %c0_7 = arith.constant 0 : index
    %7 = vector.load %arg5[%c0_4, %c0_5, %c0_6, %c0_7] : memref<1x1x8x32xf32, #tpu.memory_space<vmem>>, vector<1x1x8x32xf32>
    %8 = vector.shape_cast %7 : vector<1x1x8x32xf32> to vector<8x32xf32>
    %c0_8 = arith.constant 0 : index
    %c0_9 = arith.constant 0 : index
    %c0_10 = arith.constant 0 : index
    %c0_11 = arith.constant 0 : index
    %9 = vector.load %arg6[%c0_8, %c0_9, %c0_10, %c0_11] : memref<1x1x8x32xf32, #tpu.memory_space<vmem>>, vector<1x1x8x32xf32>
    %10 = vector.shape_cast %9 : vector<1x1x8x32xf32> to vector<8x32xf32>
    %cst_12 = arith.constant dense<0.000000e+00> : vector<8x8xf32>
    %11 = tpu.matmul %6, %8, %cst_12 {dimension_numbers = #tpu.dot_dimension_numbers<[1], [1], [0], [0], [0, 0, 1, 0], [], []>} : vector<8x32xf32>, vector<8x32xf32>, vector<8x8xf32> -> vector<8x8xf32>
    %c0_13 = arith.constant 0 : index
    %c0_14 = arith.constant 0 : index
    %12 = vector.load %arg9[%c0_13, %c0_14] : memref<8x1xf32, #tpu.memory_space<vmem>>, vector<8x1xf32>
    %cst_15 = arith.constant dense<0xFF800000> : vector<8xf32>
    %13 = vector.multi_reduction <maximumf>, %11, %cst_15 [1] : vector<8x8xf32> to vector<8xf32>
    %14 = vector.shape_cast %13 : vector<8xf32> to vector<8x1xf32>
    %15 = arith.maximumf %12, %14 : vector<8x1xf32>
    %16 = arith.subf %12, %15 : vector<8x1xf32>
    %17 = math.exp %16 : vector<8x1xf32>
    %18 = vector.broadcast %15 : vector<8x1xf32> to vector<8x8xf32>
    %19 = arith.subf %11, %18 : vector<8x8xf32>
    %20 = math.exp %19 : vector<8x8xf32>
    %c0_16 = arith.constant 0 : index
    %c0_17 = arith.constant 0 : index
    %21 = vector.load %arg10[%c0_16, %c0_17] : memref<8x1xf32, #tpu.memory_space<vmem>>, vector<8x1xf32>
    %22 = arith.mulf %17, %21 : vector<8x1xf32>
    %cst_18 = arith.constant dense<0.000000e+00> : vector<8xf32>
    %23 = vector.multi_reduction <add>, %20, %cst_18 [1] : vector<8x8xf32> to vector<8xf32>
    %24 = vector.shape_cast %23 : vector<8xf32> to vector<8x1xf32>
    %25 = arith.addf %22, %24 : vector<8x1xf32>
    %c0_19 = arith.constant 0 : index
    %c0_20 = arith.constant 0 : index
    %26 = vector.load %arg10[%c0_19, %c0_20] : memref<8x1xf32, #tpu.memory_space<vmem>>, vector<8x1xf32>
    tpu.vector_store %arg10[%c0_19, %c0_20], %25 {strides = array<i32>} : memref<8x1xf32, #tpu.memory_space<vmem>>, vector<8x1xf32>,
    %c0_21 = arith.constant 0 : index
    %c0_22 = arith.constant 0 : index
    %27 = vector.load %arg11[%c0_21, %c0_22] : memref<8x32xf32, #tpu.memory_space<vmem>>, vector<8x32xf32>
    %28 = vector.broadcast %17 : vector<8x1xf32> to vector<8x32xf32>
    %29 = arith.mulf %28, %27 : vector<8x32xf32>
    %cst_23 = arith.constant dense<0.000000e+00> : vector<8x32xf32>
    %30 = tpu.matmul %20, %10, %cst_23 {dimension_numbers = #tpu.dot_dimension_numbers<[1], [0], [0], [1], [0, 0, 1, 1], [], []>} : vector<8x8xf32>, vector<8x32xf32>, vector<8x32xf32> -> vector<8x32xf32>
    %31 = arith.addf %29, %30 : vector<8x32xf32>
    %c0_24 = arith.constant 0 : index
    %c0_25 = arith.constant 0 : index
    %32 = vector.load %arg11[%c0_24, %c0_25] : memref<8x32xf32, #tpu.memory_space<vmem>>, vector<8x32xf32>
    tpu.vector_store %arg11[%c0_24, %c0_25], %31 {strides = array<i32>} : memref<8x32xf32, #tpu.memory_space<vmem>>, vector<8x32xf32>,
    %c0_26 = arith.constant 0 : index
    %c0_27 = arith.constant 0 : index
    %33 = vector.load %arg9[%c0_26, %c0_27] : memref<8x1xf32, #tpu.memory_space<vmem>>, vector<8x1xf32>
    tpu.vector_store %arg9[%c0_26, %c0_27], %15 {strides = array<i32>} : memref<8x1xf32, #tpu.memory_space<vmem>>, vector<8x1xf32>,
    %c0_i32_28 = arith.constant 0 : i32
    %34 = arith.cmpi eq, %arg3, %c0_i32_28 : i32
    %35 = arith.extui %34 : i1 to i32
    %c0_i32_29 = arith.constant 0 : i32
    %36 = arith.cmpi ne, %35, %c0_i32_29 : i32
    scf.if %36 {
      %c0_30 = arith.constant 0 : index
      %c0_31 = arith.constant 0 : index
      %37 = vector.load %arg10[%c0_30, %c0_31] : memref<8x1xf32, #tpu.memory_space<vmem>>, vector<8x1xf32>
      %38 = tpu.reciprocal %37 : vector<8x1xf32> -> vector<8x1xf32>
      %c0_32 = arith.constant 0 : index
      %c0_33 = arith.constant 0 : index
      %39 = vector.load %arg11[%c0_32, %c0_33] : memref<8x32xf32, #tpu.memory_space<vmem>>, vector<8x32xf32>
      %40 = vector.broadcast %38 : vector<8x1xf32> to vector<8x32xf32>
      %41 = arith.mulf %39, %40 : vector<8x32xf32>
      %c0_34 = arith.constant 0 : index
      %c0_35 = arith.constant 0 : index
      %c0_36 = arith.constant 0 : index
      %c0_37 = arith.constant 0 : index
      %42 = vector.load %arg7[%c0_34, %c0_35, %c0_36, %c0_37] : memref<1x1x8x32xf32, #tpu.memory_space<vmem>>, vector<1x1x8x32xf32>
      %43 = vector.shape_cast %42 : vector<1x1x8x32xf32> to vector<8x32xf32>
      %44 = vector.shape_cast %41 : vector<8x32xf32> to vector<1x1x8x32xf32>
      tpu.vector_store %arg7[%c0_34, %c0_35, %c0_36, %c0_37], %44 {strides = array<i32>} : memref<1x1x8x32xf32, #tpu.memory_space<vmem>>, vector<1x1x8x32xf32>,
      %c0_38 = arith.constant 0 : index
      %c0_39 = arith.constant 0 : index
      %45 = vector.load %arg9[%c0_38, %c0_39] : memref<8x1xf32, #tpu.memory_space<vmem>>, vector<8x1xf32>
      %c0_40 = arith.constant 0 : index
      %c0_41 = arith.constant 0 : index
      %46 = vector.load %arg10[%c0_40, %c0_41] : memref<8x1xf32, #tpu.memory_space<vmem>>, vector<8x1xf32>
      %47 = math.log %46 : vector<8x1xf32>
      %48 = arith.addf %45, %47 : vector<8x1xf32>
      %c0_42 = arith.constant 0 : index
      %c0_43 = arith.constant 0 : index
      %c0_44 = arith.constant 0 : index
      %c0_45 = arith.constant 0 : index
      %49 = vector.load %arg8[%c0_42, %c0_43, %c0_44, %c0_45] : memref<1x1x8x1xf32, #tpu.memory_space<vmem>>, vector<1x1x8x1xf32>
      %50 = vector.shape_cast %49 : vector<1x1x8x1xf32> to vector<8x1xf32>
      %51 = vector.shape_cast %48 : vector<8x1xf32> to vector<1x1x8x1xf32>
      tpu.vector_store %arg8[%c0_42, %c0_43, %c0_44, %c0_45], %51 {strides = array<i32>} : memref<1x1x8x1xf32, #tpu.memory_space<vmem>>, vector<1x1x8x1xf32>,
    } else {
    }
    return
  }
  func.func @transform_0(%arg0: i32, %arg1: i32, %arg2: i32, %arg3: i32) -> (i32, i32, i32, i32) {
    %c0_i32 = arith.constant 0 : i32
    %c0_i32_0 = arith.constant 0 : i32
    return %arg0, %arg1, %arg2, %c0_i32 : i32, i32, i32, i32
  }
  func.func @transform_1(%arg0: i32, %arg1: i32, %arg2: i32, %arg3: i32) -> (i32, i32, i32, i32) {
    %c0_i32 = arith.constant 0 : i32
    %c0_i32_0 = arith.constant 0 : i32
    return %arg0, %arg1, %arg3, %c0_i32 : i32, i32, i32, i32
  }
  func.func @transform_2(%arg0: i32, %arg1: i32, %arg2: i32, %arg3: i32) -> (i32, i32, i32, i32) {
    %c0_i32 = arith.constant 0 : i32
    %c0_i32_0 = arith.constant 0 : i32
    return %arg0, %arg1, %arg3, %c0_i32 : i32, i32, i32, i32
  }
  func.func @transform_3(%arg0: i32, %arg1: i32, %arg2: i32, %arg3: i32) -> (i32, i32, i32, i32) {
    %c0_i32 = arith.constant 0 : i32
    %c0_i32_0 = arith.constant 0 : i32
    return %arg0, %arg1, %arg2, %c0_i32 : i32, i32, i32, i32
  }
  func.func @transform_4(%arg0: i32, %arg1: i32, %arg2: i32, %arg3: i32) -> (i32, i32, i32, i32) {
    %c0_i32 = arith.constant 0 : i32
    %c0_i32_0 = arith.constant 0 : i32
    return %arg0, %arg1, %arg2, %c0_i32 : i32, i32, i32, i32
  }
}

</mosaic_0001>

<llo_original>
// kernel: tpu_custom_call.1
$region0: #{tpu_custom_call.1}
  #allocation0 [shape = 'u32[]', space=smem, size = 0x4, offset = 0x4, fixed_abs, tag = 'smem constant byte address 0x4 - core index']
  #allocation1 [shape = 'u32[144,128]{1,0:T(1,128)}', space=vmem, size = 0x12000, scoped, tag = 'internal scratch']
  #allocation2 [shape = 'f32[8,1]{1,0:T(8,128)}', space=vmem, size = 0x1000, scoped, tag = 'scratch operand']
  #allocation3 [shape = 'f32[8,1]{1,0:T(8,128)}', space=vmem, size = 0x1000, scoped, tag = 'scratch operand']
  #allocation4 [shape = 'f32[8,32]{1,0:T(8,128)}', space=vmem, size = 0x1000, scoped, tag = 'scratch operand']
  %s0 = inlined_call_operand.hbm [shape: f32[2,2,8,32], index: 0, kind: input, shape index: {}]
  %s1 = inlined_call_operand.hbm [shape: f32[2,2,8,32], index: 1, kind: input, shape index: {}]
  %s2 = inlined_call_operand.hbm [shape: f32[2,2,8,32], index: 2, kind: input, shape index: {}]
  %s3 = inlined_call_operand.hbm [shape: f32[2,2,8,32], index: 3, kind: output, shape index: {0}]
  %s4 = inlined_call_operand.vmem [shape: f32[2,2,8,1], index: 4, kind: output, shape index: {1}]
  %5 = xla_tuple %s3, %s4
  %s6 = sld [smem:[#allocation0]]
  $region73: #{tpu_custom_call.1} parent=0
    _
  %s8 = ssub.s32 1, %s6
  %s9 = scalar_select 0, %s8, %s6
  $region1: #{tpu_custom_call.1} parent=0
    #allocation5 [shape = 'u8[8192]{0}', space=vmem, size = 0x2000, scoped, tag = 'input window, operand 0']
    #allocation6 [shape = 's32[2]{0}', space=sflag, size = 0x8, scoped, tag = 'scoped memory for tpu_custom_call.1']
    #allocation7 [shape = 's32[2]{0}', space=sflag, size = 0x8, scoped, tag = 'scoped memory for tpu_custom_call.1']
    #allocation8 [shape = 'u8[8192]{0}', space=vmem, size = 0x2000, scoped, tag = 'input window, operand 1']
    #allocation9 [shape = 's32[2]{0}', space=sflag, size = 0x8, scoped, tag = 'scoped memory for tpu_custom_call.1']
    #allocation10 [shape = 'u8[8192]{0}', space=vmem, size = 0x2000, scoped, tag = 'input window, operand 2']
    #allocation11 [shape = 'u8[8192]{0}', space=vmem, size = 0x2000, scoped, tag = 'output window, operand 0']
    %10 = vsyncpa [#allocation6], 0
    %s11 = scalar_lea.sflag [#allocation6], 1
    %12 = vsyncpa %s11, 0
    %13 = vsyncpa [#allocation9], 0
    %s14 = scalar_lea.sflag [#allocation9], 1
    %15 = vsyncpa %s14, 0
    %16 = vsyncpa [#allocation7], 0
    %s17 = scalar_lea.sflag [#allocation7], 1
    %18 = vsyncpa %s17, 0
    loop: start=0, step=1, limit=6
    $region2: #{tpu_custom_call.1} parent=1 // loop_pre_header
      _
    $region3: #{tpu_custom_call.1} parent=1 // loop_header
      %s20 = sphi 0, %s24
      %p21 = scmp.ge.s32.totalorder %s20, 6
      %s27 = sphi 0, %s53
      %s28 = sphi 0, %s49
      %s29 = sphi 0, %s45
      %s30 = sphi 0, %s41
      %s31 = sphi 0, %s27
      %s32 = sphi 0, %s28
      %s33 = sphi 0, %s29
      %s34 = sphi 0, %s30
      %s35 = sphi 0, %s31
      %s36 = sphi 0, %s32
      %s37 = sphi 0, %s33
      %s38 = sphi 0, %s34
      %s60 = sphi 0, %s62
      %s63 = sphi 0, %s60
      %s64 = sphi 0, %s63
      %s80 = sphi 0, %s64
      %s90 = sphi 0, %s92
      %s93 = sphi 0, %s90
      %s94 = sphi 0, %s93
      %s110 = sphi 0, %s94
      %s120 = sphi 0, %s122
      %s123 = sphi 0, %s120
      %s124 = sphi 0, %s123
      %s140 = sphi 0, %s124
      %s150 = sphi 0, %s152
      %s153 = sphi 0, %s150
      %s154 = sphi 0, %s153
      %s170 = sphi 0, %s154
      %s180 = sphi 0, %s182
      %s183 = sphi 0, %s180
      %s184 = sphi 0, %s183
      %s200 = sphi 0, %s184
    $region4: #{tpu_custom_call.1} parent=1 // loop_header_branch
      %23 = sbr.rel (%p21) target = $region8
    $region5: #{tpu_custom_call.1} parent=1 // loop_body
      %s25 = ssub.s32 %s20, 1
      %s26 = ssub.s32 %s20, 2
      %s39 = sadd.s32 1, %s30
      %p40 = scmp.ge.s32.totalorder %s39, 1
      %s41 = scalar_select %p40, 0, %s39
      %s42 = sadd.s32 1, %s29
      %s43 = scalar_select %p40, %s42, %s29
      %p44 = scmp.ge.s32.totalorder %s43, 1
      %s45 = scalar_select %p44, 0, %s43
      %s46 = sadd.s32 1, %s28
      %s47 = scalar_select %p44, %s46, %s28
      %p48 = scmp.ge.s32.totalorder %s47, 2
      %s49 = scalar_select %p48, 0, %s47
      %s50 = sadd.s32 1, %s27
      %s51 = scalar_select %p48, %s50, %s27
      %p52 = scmp.ge.s32.totalorder %s51, 2
      %s53 = scalar_select %p52, 0, %s51
      %s54 = ssub.s32 %s27, %s53
      %s55 = ssub.s32 %s28, %s49
      %s56 = sor.u32 %s54, %s55
      %s57 = ssub.s32 %s29, %s45
      %s58 = sor.u32 %s56, %s57
      %p59 = scmp.eq.s32.totalorder %s58, 0
      %s61 = sadd.s32 %s60, 1
      %s62 = scalar_select %p59, %s60, %s61
      %p65 = pneg %p59
      %p66 = scmp.eq.s32.totalorder %s20, 3
      %p67 = por %p65, %p66
      %p68 = scmp.ne.s32.totalorder %s60, %s63
      %p69 = scmp.eq.s32.totalorder %s20, 0
      %p70 = por %p68, %p69
      %p71 = scmp.ne.s32.totalorder %s60, %s63
      %p72 = scmp.eq.s32.totalorder %s25, 3
      %p73 = por %p71, %p72
      %p74 = scmp.ne.s32.totalorder %s63, %s64
      %p75 = scmp.eq.s32.totalorder %s25, 0
      %p76 = por %p74, %p75
      %p77 = scmp.ne.s32.totalorder %s63, %s64
      %p78 = scmp.eq.s32.totalorder %s26, 3
      %p79 = por %p77, %p78
      %p81 = scmp.ne.s32.totalorder %s64, %s80
      %p82 = scmp.eq.s32.totalorder %s26, 0
      %p83 = por %p81, %p82
      %s84 = ssub.s32 %s27, %s53
      %s85 = ssub.s32 %s28, %s49
      %s86 = sor.u32 %s84, %s85
      %s87 = ssub.s32 %s30, %s41
      %s88 = sor.u32 %s86, %s87
      %p89 = scmp.eq.s32.totalorder %s88, 0
      %s91 = sadd.s32 %s90, 1
      %s92 = scalar_select %p89, %s90, %s91
      %p95 = pneg %p89
      %p96 = scmp.eq.s32.totalorder %s20, 3
      %p97 = por %p95, %p96
      %p98 = scmp.ne.s32.totalorder %s90, %s93
      %p99 = scmp.eq.s32.totalorder %s20, 0
      %p100 = por %p98, %p99
      %p101 = scmp.ne.s32.totalorder %s90, %s93
      %p102 = scmp.eq.s32.totalorder %s25, 3
      %p103 = por %p101, %p102
      %p104 = scmp.ne.s32.totalorder %s93, %s94
      %p105 = scmp.eq.s32.totalorder %s25, 0
      %p106 = por %p104, %p105
      %p107 = scmp.ne.s32.totalorder %s93, %s94
      %p108 = scmp.eq.s32.totalorder %s26, 3
      %p109 = por %p107, %p108
      %p111 = scmp.ne.s32.totalorder %s94, %s110
      %p112 = scmp.eq.s32.totalorder %s26, 0
      %p113 = por %p111, %p112
      %s114 = ssub.s32 %s27, %s53
      %s115 = ssub.s32 %s28, %s49
      %s116 = sor.u32 %s114, %s115
      %s117 = ssub.s32 %s30, %s41
      %s118 = sor.u32 %s116, %s117
      %p119 = scmp.eq.s32.totalorder %s118, 0
      %s121 = sadd.s32 %s120, 1
      %s122 = scalar_select %p119, %s120, %s121
      %p125 = pneg %p119
      %p126 = scmp.eq.s32.totalorder %s20, 3
      %p127 = por %p125, %p126
      %p128 = scmp.ne.s32.totalorder %s120, %s123
      %p129 = scmp.eq.s32.totalorder %s20, 0
      %p130 = por %p128, %p129
      %p131 = scmp.ne.s32.totalorder %s120, %s123
      %p132 = scmp.eq.s32.totalorder %s25, 3
      %p133 = por %p131, %p132
      %p134 = scmp.ne.s32.totalorder %s123, %s124
      %p135 = scmp.eq.s32.totalorder %s25, 0
      %p136 = por %p134, %p135
      %p137 = scmp.ne.s32.totalorder %s123, %s124
      %p138 = scmp.eq.s32.totalorder %s26, 3
      %p139 = por %p137, %p138
      %p141 = scmp.ne.s32.totalorder %s124, %s140
      %p142 = scmp.eq.s32.totalorder %s26, 0
      %p143 = por %p141, %p142
      %s144 = ssub.s32 %s27, %s53
      %s145 = ssub.s32 %s28, %s49
      %s146 = sor.u32 %s144, %s145
      %s147 = ssub.s32 %s29, %s45
      %s148 = sor.u32 %s146, %s147
      %p149 = scmp.eq.s32.totalorder %s148, 0
      %s151 = sadd.s32 %s150, 1
      %s152 = scalar_select %p149, %s150, %s151
      %p155 = pneg %p149
      %p156 = scmp.eq.s32.totalorder %s20, 3
      %p157 = por %p155, %p156
      %p158 = scmp.ne.s32.totalorder %s150, %s153
      %p159 = scmp.eq.s32.totalorder %s20, 0
      %p160 = por %p158, %p159
      %p161 = scmp.ne.s32.totalorder %s150, %s153
      %p162 = scmp.eq.s32.totalorder %s25, 3
      %p163 = por %p161, %p162
      %p164 = scmp.ne.s32.totalorder %s153, %s154
      %p165 = scmp.eq.s32.totalorder %s25, 0
      %p166 = por %p164, %p165
      %p167 = scmp.ne.s32.totalorder %s153, %s154
      %p168 = scmp.eq.s32.totalorder %s26, 3
      %p169 = por %p167, %p168
      %p171 = scmp.ne.s32.totalorder %s154, %s170
      %p172 = scmp.eq.s32.totalorder %s26, 0
      %p173 = por %p171, %p172
      %s174 = ssub.s32 %s27, %s53
      %s175 = ssub.s32 %s28, %s49
      %s176 = sor.u32 %s174, %s175
      %s177 = ssub.s32 %s29, %s45
      %s178 = sor.u32 %s176, %s177
      %p179 = scmp.eq.s32.totalorder %s178, 0
      %s181 = sadd.s32 %s180, 1
      %s182 = scalar_select %p179, %s180, %s181
      %p185 = pneg %p179
      %p186 = scmp.eq.s32.totalorder %s20, 3
      %p187 = por %p185, %p186
      %p188 = scmp.ne.s32.totalorder %s180, %s183
      %p189 = scmp.eq.s32.totalorder %s20, 0
      %p190 = por %p188, %p189
      %p191 = scmp.ne.s32.totalorder %s180, %s183
      %p192 = scmp.eq.s32.totalorder %s25, 3
      %p193 = por %p191, %p192
      %p194 = scmp.ne.s32.totalorder %s183, %s184
      %p195 = scmp.eq.s32.totalorder %s25, 0
      %p196 = por %p194, %p195
      %p197 = scmp.ne.s32.totalorder %s183, %s184
      %p198 = scmp.eq.s32.totalorder %s26, 3
      %p199 = por %p197, %p198
      %p201 = scmp.ne.s32.totalorder %s184, %s200
      %p202 = scmp.eq.s32.totalorder %s26, 0
      %p203 = por %p201, %p202
      %p204 = scmp.le.s32.totalorder 1, %s20
      %p205 = scmp.lt.s32.totalorder %s20, 5
      %p206 = pnand %p204, %p205
      %p207 = pneg %p206
      // Predicated region
      $region9: #{tpu_custom_call.1} parent=5 // pred_check
        _
      $region10: #{tpu_custom_call.1} parent=5 // pred_check_branch
        %209 = sbr.rel (%p206) target = $region12
      $region11: #{tpu_custom_call.1} parent=5 // pred_region
        %s210 = ssub.s32 %s20, 1
      $region12: #{tpu_custom_call.1} parent=5 // pred_fallthru
        _
      %p211 = scmp.lt.s32.totalorder %s20, 4
      // Predicated region
      $region13: #{tpu_custom_call.1} parent=5 // pred_check
        %p212 = pneg %p211
      $region14: #{tpu_custom_call.1} parent=5 // pred_check_branch
        %214 = sbr.rel (%p212) target = $region16
      $region15: #{tpu_custom_call.1} parent=5 // pred_region
        // Predicated region
        $region17: #{tpu_custom_call.1} parent=15 // pred_check
          %p215 = pneg %p70
        $region18: #{tpu_custom_call.1} parent=15 // pred_check_branch
          %217 = sbr.rel (%p215) target = $region20
        $region19: #{tpu_custom_call.1} parent=15 // pred_region
          %s218 = sand.u32 %s60, 1
          %s219 = scalar_lea.sflag [#allocation6], %s218
          %s220 = sand.u32 %s60, 1
          %s221 = smul.addr %s220, 8
          %s222 = scalar_lea.vmem [#allocation5], %s221
          %s224 = ssub.s32 128, 128
          %225 = vsyncadd %s219, %s224
          %s226 = sadd.s32 %s29, %s28
          %s227 = smul.addr %s27, 2
          %s228 = sadd.s32 %s226, %s227
          %s229 = smul.addr %s228, 128
          %s230 = scalar_lea.hbm %s0, %s229
          %s232 = sshll.u32 %s222, 4
          %s233 = int_to_ptr.vmem [resolvable:$true] %s232
          %235 = dma.hbm_to_vmem [thread:$0]  %s230, 128, %s233, %s219
        $region20: #{tpu_custom_call.1} parent=15 // pred_fallthru
          _
        // Predicated region
        $region21: #{tpu_custom_call.1} parent=15 // pred_check
          %p236 = pneg %p100
        $region22: #{tpu_custom_call.1} parent=15 // pred_check_branch
          %238 = sbr.rel (%p236) target = $region24
        $region23: #{tpu_custom_call.1} parent=15 // pred_region
          %s239 = sand.u32 %s20, 1
          %s240 = scalar_lea.sflag [#allocation9], %s239
          %s241 = sand.u32 %s90, 1
          %s242 = smul.addr %s241, 8
          %s243 = scalar_lea.vmem [#allocation8], %s242
          %s245 = ssub.s32 128, 128
          %246 = vsyncadd %s240, %s245
          %s247 = sadd.s32 %s30, %s28
          %s248 = smul.addr %s27, 2
          %s249 = sadd.s32 %s247, %s248
          %s250 = smul.addr %s249, 128
          %s251 = scalar_lea.hbm %s1, %s250
          %s253 = sshll.u32 %s243, 4
          %s254 = int_to_ptr.vmem [resolvable:$true] %s253
          %256 = dma.hbm_to_vmem [thread:$0]  %s251, 128, %s254, %s240
        $region24: #{tpu_custom_call.1} parent=15 // pred_fallthru
          _
        // Predicated region
        $region25: #{tpu_custom_call.1} parent=15 // pred_check
          %p257 = pneg %p130
        $region26: #{tpu_custom_call.1} parent=15 // pred_check_branch
          %259 = sbr.rel (%p257) target = $region28
        $region27: #{tpu_custom_call.1} parent=15 // pred_region
          %s260 = sand.u32 %s20, 1
          %s261 = scalar_lea.sflag [#allocation9], %s260
          %s262 = sand.u32 %s120, 1
          %s263 = smul.addr %s262, 8
          %s264 = scalar_lea.vmem [#allocation10], %s263
          %s266 = ssub.s32 128, 128
          %267 = vsyncadd %s261, %s266
          %s268 = sadd.s32 %s30, %s28
          %s269 = smul.addr %s27, 2
          %s270 = sadd.s32 %s268, %s269
          %s271 = smul.addr %s270, 128
          %s272 = scalar_lea.hbm %s2, %s271
          %s274 = sshll.u32 %s264, 4
          %s275 = int_to_ptr.vmem [resolvable:$true] %s274
          %277 = dma.hbm_to_vmem [thread:$0]  %s272, 128, %s275, %s261
        $region28: #{tpu_custom_call.1} parent=15 // pred_fallthru
          _
      $region16: #{tpu_custom_call.1} parent=5 // pred_fallthru
        _
      %p278 = scmp.le.s32.totalorder 1, %s20
      %p279 = scmp.lt.s32.totalorder %s20, 5
      %p280 = pnand %p278, %p279
      %p281 = pneg %p280
      // Predicated region
      $region29: #{tpu_custom_call.1} parent=5 // pred_check
        _
      $region30: #{tpu_custom_call.1} parent=5 // pred_check_branch
        %283 = sbr.rel (%p280) target = $region32
      $region31: #{tpu_custom_call.1} parent=5 // pred_region
        %s284 = ssub.s32 %s20, 1
        %s285 = sand.u32 %s63, 1
        %s286 = scalar_lea.sflag [#allocation6], %s285
        %s287 = sand.u32 %s63, 1
        %s288 = smul.addr %s287, 8
        %s289 = scalar_lea.vmem [#allocation5], %s288
        // Predicated region
        $region33: #{tpu_custom_call.1} parent=31 // pred_check
          %p290 = pneg %p76
        $region34: #{tpu_custom_call.1} parent=31 // pred_check_branch
          %292 = sbr.rel (%p290) target = $region36
        $region35: #{tpu_custom_call.1} parent=31 // pred_region
          %293 = dma.done %s286, 128
        $region36: #{tpu_custom_call.1} parent=31 // pred_fallthru
          _
        %s294 = sand.u32 %s25, 1
        %s295 = scalar_lea.sflag [#allocation9], %s294
        %s296 = sand.u32 %s93, 1
        %s297 = smul.addr %s296, 8
        %s298 = scalar_lea.vmem [#allocation8], %s297
        // Predicated region
        $region37: #{tpu_custom_call.1} parent=31 // pred_check
          %p299 = pneg %p106
        $region38: #{tpu_custom_call.1} parent=31 // pred_check_branch
          %301 = sbr.rel (%p299) target = $region40
        $region39: #{tpu_custom_call.1} parent=31 // pred_region
          %302 = dma.done %s295, 128
        $region40: #{tpu_custom_call.1} parent=31 // pred_fallthru
          _
        %s303 = sand.u32 %s25, 1
        %s304 = scalar_lea.sflag [#allocation9], %s303
        %s305 = sand.u32 %s123, 1
        %s306 = smul.addr %s305, 8
        %s307 = scalar_lea.vmem [#allocation10], %s306
        // Predicated region
        $region41: #{tpu_custom_call.1} parent=31 // pred_check
          %p308 = pneg %p136
        $region42: #{tpu_custom_call.1} parent=31 // pred_check_branch
          %310 = sbr.rel (%p308) target = $region44
        $region43: #{tpu_custom_call.1} parent=31 // pred_region
          %311 = dma.done %s304, 128
        $region44: #{tpu_custom_call.1} parent=31 // pred_fallthru
          _
        %s312 = sand.u32 %s63, 1
        %s313 = scalar_lea.sflag [#allocation6], %s312
        %s314 = sand.u32 %s63, 1
        %s315 = smul.addr %s314, 8
        %s316 = scalar_lea.vmem [#allocation5], %s315
        %p317 = pneg %p76
        %p318 = pneg %p73
        %s319 = sand.u32 %s25, 1
        %s320 = scalar_lea.sflag [#allocation9], %s319
        %s321 = sand.u32 %s93, 1
        %s322 = smul.addr %s321, 8
        %s323 = scalar_lea.vmem [#allocation8], %s322
        %p324 = pneg %p106
        %p325 = pneg %p103
        %s326 = sand.u32 %s25, 1
        %s327 = scalar_lea.sflag [#allocation9], %s326
        %s328 = sand.u32 %s123, 1
        %s329 = smul.addr %s328, 8
        %s330 = scalar_lea.vmem [#allocation10], %s329
        %p331 = pneg %p136
        %p332 = pneg %p133
        %p333 = pneg %p166
        %p334 = pneg %p163
        %s335 = sand.u32 %s153, 1
        %s336 = scalar_lea.sflag [#allocation7], %s335
        %s337 = sand.u32 %s153, 1
        %s338 = smul.addr %s337, 8
        %s339 = scalar_lea.vmem [#allocation11], %s338
        %p340 = pneg %p196
        %p341 = pneg %p193
        %p342 = scmp.lt.s32.totalorder %s31, 1
        %s343 = scalar_select %p342, %s31, 1
        %p344 = scmp.lt.s32.totalorder %s32, 1
        %s345 = scalar_select %p344, %s32, 1
        %p346 = scmp.lt.s32.totalorder %s33, 0
        %s347 = scalar_select %p346, %s33, 0
        %s348 = sadd.s32 %s347, %s345
        %s349 = smul.addr %s343, 2
        %s350 = sadd.s32 %s348, %s349
        %s351 = smul.addr %s350, 8
        %s352 = scalar_lea.vmem %s4, %s351
        %p353 = scmp.lt.s32.totalorder %s31, 1
        %s354 = scalar_select %p353, %s31, 1
        %p355 = scmp.lt.s32.totalorder %s32, 1
        %s356 = scalar_select %p355, %s32, 1
        %p357 = scmp.lt.s32.totalorder %s33, 0
        %s358 = scalar_select %p357, %s33, 0
        %s359 = sadd.s32 %s358, %s356
        %s360 = smul.addr %s354, 2
        %s361 = sadd.s32 %s359, %s360
        %s362 = smul.addr %s361, 8
        %s363 = scalar_lea.vmem %s4, %s362
        %p364 = scmp.eq.s32.totalorder %s34, 0
        // Predicated region
        $region45: #{tpu_custom_call.1} parent=31 // pred_check
          %p365 = pneg %p364
        $region46: #{tpu_custom_call.1} parent=31 // pred_check_branch
          %367 = sbr.rel (%p365) target = $region48
        $region47: #{tpu_custom_call.1} parent=31 // pred_region
          %vm368 = vcmask 7168
          %369 = vst.msk [vmem:[#allocation2] sm:$0xff] %vm368, -inf
          %370 = vst.msk [vmem:[#allocation3] sm:$0xff] %vm368, 0.0
          %vm371 = vcmask 261120
          %372 = vst.msk [vmem:[#allocation4] sm:$0xff] %vm371, 0.0
        $region48: #{tpu_custom_call.1} parent=31 // pred_fallthru
          _
        %v373 = vld [vmem:[%s289] sm:$0xff]
        %v374 = vmul.f32 %v373, 0.17677669
        %v375 = vld [vmem:[%s298] sm:$0xff]
        %v376 = vld [vmem:[%s307] sm:$0xff]
        %vm377 = vcmask 261120
        %v379 = vsel %vm377, %v374, 0
        %v382 = vsel %vm377, %v375, 0
        %384 = vmatprep.subr.mxu0 0.0
        %385 = vmatpush1.xpose.msra.mxu0 %v382
        %386 = vmatprep.subr.mxu0 0.0
        %387 = vmatpush1.xpose.msra.mxu0 0.0
        %388 = vmatprep.subr.mxu0 0.0
        %389 = vmatpush1.xpose.msra.mxu0 0.0
        %390 = vmatprep.subr.mxu0 0.0
        %391 = vmatpush1.xpose.msra.mxu0 0.0
        %392 = vmatprep.subr.mxu0 0.0
        %393 = vmatpush1.xpose.msra.mxu0 0.0
        %394 = vmatprep.subr.mxu0 0.0
        %395 = vmatpush1.xpose.msra.mxu0 0.0
        %396 = vmatprep.subr.mxu0 0.0
        %397 = vmatpush1.xpose.msra.mxu0 0.0
        %398 = vmatprep.subr.mxu0 0.0
        %399 = vmatpush1.xpose.msra.mxu0 0.0
        %400 = vmatprep.subr.mxu0 0.0
        %401 = vmatpush1.xpose.msra.mxu0 0.0
        %402 = vmatprep.subr.mxu0 0.0
        %403 = vmatpush1.xpose.msra.mxu0 0.0
        %404 = vmatprep.subr.mxu0 0.0
        %405 = vmatpush1.xpose.msra.mxu0 0.0
        %406 = vmatprep.subr.mxu0 0.0
        %407 = vmatpush1.xpose.msra.mxu0 0.0
        %408 = vmatprep.subr.mxu0 0.0
        %409 = vmatpush1.xpose.msra.mxu0 0.0
        %410 = vmatprep.subr.mxu0 0.0
        %411 = vmatpush1.xpose.msra.mxu0 0.0
        %412 = vmatprep.subr.mxu0 0.0
        %413 = vmatpush1.xpose.msra.mxu0 0.0
        %414 = vmatprep.subr.mxu0 0.0
        %415 = vmatpush1.xpose.msra.mxu0 0.0
        %416 = vmatprep.subr.mxu0 0.0
        %417 = vmatpush1.xpose.msra.mxu0 0.0
        %418 = vmatprep.subr.mxu0 0.0
        %419 = vmatpush1.xpose.msra.mxu0 0.0
        %420 = vmatprep.subr.mxu0 0.0
        %421 = vmatpush1.xpose.msra.mxu0 0.0
        %422 = vmatprep.subr.mxu0 0.0
        %423 = vmatpush1.xpose.msra.mxu0 0.0
        %424 = vmatprep.subr.mxu0 0.0
        %425 = vmatpush1.xpose.msra.mxu0 0.0
        %426 = vmatprep.subr.mxu0 0.0
        %427 = vmatpush1.xpose.msra.mxu0 0.0
        %428 = vmatprep.subr.mxu0 0.0
        %429 = vmatpush1.xpose.msra.mxu0 0.0
        %430 = vmatprep.subr.mxu0 0.0
        %431 = vmatpush1.xpose.msra.mxu0 0.0
        %432 = vmatprep.subr.mxu0 0.0
        %433 = vmatpush1.xpose.msra.mxu0 0.0
        %434 = vmatprep.subr.mxu0 0.0
        %435 = vmatpush1.xpose.msra.mxu0 0.0
        %436 = vmatprep.subr.mxu0 0.0
        %437 = vmatpush1.xpose.msra.mxu0 0.0
        %438 = vmatprep.subr.mxu0 0.0
        %439 = vmatpush1.xpose.msra.mxu0 0.0
        %440 = vmatprep.subr.mxu0 0.0
        %441 = vmatpush1.xpose.msra.mxu0 0.0
        %442 = vmatprep.subr.mxu0 0.0
        %443 = vmatpush1.xpose.msra.mxu0 0.0
        %444 = vmatprep.subr.mxu0 0.0
        %445 = vmatpush1.xpose.msra.mxu0 0.0
        %446 = vmatprep.subr.mxu0 0.0
        %447 = vmatpush1.xpose.msra.mxu0 0.0
        %448 = vmatprep.mubr.f32.mxu0 0.0
        %449 = vmatmul.mubr.f32.gmra.mrb[0].mxu0 %v379
        %v450 = vpop.f32.mrb[0].mxu0
        %v451 = vadd.f32 0.0, %v450
        %v452 = vpop.f32.mrb[0].mxu0
        %453 = vdwg.mxu0
        %v454 = vld [vmem:[#allocation2] sm:$0xff]
        %vm455 = vcmask 64512
        %v456 = vsel %vm455, %v451, -inf
        %457 = vmax.xlane.f32.xlu0 %v456
        %v458 = vpop.xlane.xlu0 %457
        %v459 = vmax.f32 %v454, %v458
        %v460 = vsub.f32 %v454, %v459
        %v461 = vmul.f32 %v460, 1.442695
        %v462 = vpow.pop %v461
        %464 = vset.pattern.permute.xlu0 0
        %465 = vperm.xlu0 %464, %v459
        %v466 = vpop.permute.xlu0 %465
        %v468 = vsub.f32 %v451, %v466
        %v469 = vmul.f32 %v468, 1.442695
        %v470 = vpow.pop %v469
        %v471 = vld [vmem:[#allocation3] sm:$0xff]
        %v472 = vmul.f32 %v462, %v471
        %v473 = vsel %vm455, %v470, 0.0
        %474 = vadd.xlane.f32.xlu0 %v473
        %v475 = vpop.xlane.xlu0 %474
        %v476 = vadd.f32 %v472, %v475
        %vm477 = vcmask 7168
        %478 = vst.msk [vmem:[#allocation3] sm:$0xff] %vm477, %v476
        %v479 = vld [vmem:[#allocation4] sm:$0xff]
        %481 = vset.pattern.permute.xlu0 0
        %482 = vperm.xlu0 %481, %v462
        %v483 = vpop.permute.xlu0 %482
        %v485 = vmul.f32 %v483, %v479
        %v487 = vsel %vm455, %v470, 0
        %489 = vmatprep.subr.mxu0 0.0
        %490 = vmatpush1.msra.mxu0 %v376
        %491 = vmatprep.subr.mxu0 0.0
        %492 = vmatpush1.msra.mxu0 0.0
        %493 = vmatprep.subr.mxu0 0.0
        %494 = vmatpush1.msra.mxu0 0.0
        %495 = vmatprep.subr.mxu0 0.0
        %496 = vmatpush1.msra.mxu0 0.0
        %497 = vmatprep.subr.mxu0 0.0
        %498 = vmatpush1.msra.mxu0 0.0
        %499 = vmatprep.subr.mxu0 0.0
        %500 = vmatpush1.msra.mxu0 0.0
        %501 = vmatprep.subr.mxu0 0.0
        %502 = vmatpush1.msra.mxu0 0.0
        %503 = vmatprep.subr.mxu0 0.0
        %504 = vmatpush1.msra.mxu0 0.0
        %505 = vmatprep.subr.mxu0 0.0
        %506 = vmatpush1.msra.mxu0 0.0
        %507 = vmatprep.subr.mxu0 0.0
        %508 = vmatpush1.msra.mxu0 0.0
        %509 = vmatprep.subr.mxu0 0.0
        %510 = vmatpush1.msra.mxu0 0.0
        %511 = vmatprep.subr.mxu0 0.0
        %512 = vmatpush1.msra.mxu0 0.0
        %513 = vmatprep.subr.mxu0 0.0
        %514 = vmatpush1.msra.mxu0 0.0
        %515 = vmatprep.subr.mxu0 0.0
        %516 = vmatpush1.msra.mxu0 0.0
        %517 = vmatprep.subr.mxu0 0.0
        %518 = vmatpush1.msra.mxu0 0.0
        %519 = vmatprep.subr.mxu0 0.0
        %520 = vmatpush1.msra.mxu0 0.0
        %521 = vmatprep.subr.mxu0 0.0
        %522 = vmatpush1.msra.mxu0 0.0
        %523 = vmatprep.subr.mxu0 0.0
        %524 = vmatpush1.msra.mxu0 0.0
        %525 = vmatprep.subr.mxu0 0.0
        %526 = vmatpush1.msra.mxu0 0.0
        %527 = vmatprep.subr.mxu0 0.0
        %528 = vmatpush1.msra.mxu0 0.0
        %529 = vmatprep.subr.mxu0 0.0
        %530 = vmatpush1.msra.mxu0 0.0
        %531 = vmatprep.subr.mxu0 0.0
        %532 = vmatpush1.msra.mxu0 0.0
        %533 = vmatprep.subr.mxu0 0.0
        %534 = vmatpush1.msra.mxu0 0.0
        %535 = vmatprep.subr.mxu0 0.0
        %536 = vmatpush1.msra.mxu0 0.0
        %537 = vmatprep.subr.mxu0 0.0
        %538 = vmatpush1.msra.mxu0 0.0
        %539 = vmatprep.subr.mxu0 0.0
        %540 = vmatpush1.msra.mxu0 0.0
        %541 = vmatprep.subr.mxu0 0.0
        %542 = vmatpush1.msra.mxu0 0.0
        %543 = vmatprep.subr.mxu0 0.0
        %544 = vmatpush1.msra.mxu0 0.0
        %545 = vmatprep.subr.mxu0 0.0
        %546 = vmatpush1.msra.mxu0 0.0
        %547 = vmatprep.subr.mxu0 0.0
        %548 = vmatpush1.msra.mxu0 0.0
        %549 = vmatprep.subr.mxu0 0.0
        %550 = vmatpush1.msra.mxu0 0.0
        %551 = vmatprep.subr.mxu0 0.0
        %552 = vmatpush1.msra.mxu0 0.0
        %553 = vmatprep.mubr.f32.mxu0 0.0
        %554 = vmatmul.mubr.f32.gmra.mrb[0].mxu0 %v487
        %v555 = vpop.f32.mrb[0].mxu0
        %v556 = vadd.f32 0.0, %v555
        %v557 = vpop.f32.mrb[0].mxu0
        %558 = vdwg.mxu0
        %v559 = vadd.f32 %v485, %v556
        %560 = vst.msk [vmem:[#allocation4] sm:$0xff] %vm377, %v559
        %561 = vst.msk [vmem:[#allocation2] sm:$0xff] %vm477, %v459
        // Predicated region
        $region49: #{tpu_custom_call.1} parent=31 // pred_check
          %p562 = pneg %p364
        $region50: #{tpu_custom_call.1} parent=31 // pred_check_branch
          %564 = sbr.rel (%p562) target = $region52
        $region51: #{tpu_custom_call.1} parent=31 // pred_region
          %v565 = vld [vmem:[#allocation3] sm:$0xff]
          %v566 = vrcp.pop %v565
          %v567 = vld [vmem:[#allocation4] sm:$0xff]
          %569 = vset.pattern.permute.xlu0 0
          %570 = vperm.xlu0 %569, %v566
          %v571 = vpop.permute.xlu0 %570
          %v573 = vmul.f32 %v567, %v571
          %574 = vst.msk [vmem:[%s339] sm:$0xff] %vm377, %v573
          %v575 = vld [vmem:[#allocation2] sm:$0xff]
          %v576 = vld [vmem:[#allocation3] sm:$0xff]
          %v577 = vlog2.pop %v576
          %v578 = vmul.f32 %v577, 0.6931472
          %v579 = vadd.f32 %v575, %v578
          %580 = vst.msk [vmem:[%s363] sm:$0xff] %vm477, %v579
        $region52: #{tpu_custom_call.1} parent=31 // pred_fallthru
          _
        %s581 = sand.u32 %s153, 1
        %s582 = scalar_lea.sflag [#allocation7], %s581
        %s583 = sand.u32 %s153, 1
        %s584 = smul.addr %s583, 8
        %s585 = scalar_lea.vmem [#allocation11], %s584
        %p586 = scmp.lt.s32.totalorder %s31, 1
        %s587 = scalar_select %p586, %s31, 1
        %p588 = scmp.lt.s32.totalorder %s32, 1
        %s589 = scalar_select %p588, %s32, 1
        %p590 = scmp.lt.s32.totalorder %s33, 0
        %s591 = scalar_select %p590, %s33, 0
        %s592 = sadd.s32 %s591, %s589
        %s593 = smul.addr %s587, 2
        %s594 = sadd.s32 %s592, %s593
        %s595 = smul.addr %s594, 8
        %s596 = scalar_lea.vmem %s4, %s595
        // Predicated region
        $region53: #{tpu_custom_call.1} parent=31 // pred_check
          %p597 = pneg %p163
        $region54: #{tpu_custom_call.1} parent=31 // pred_check_branch
          %599 = sbr.rel (%p597) target = $region56
        $region55: #{tpu_custom_call.1} parent=31 // pred_region
          %s601 = ssub.s32 128, 128
          %602 = vsyncadd %s582, %s601
          %s603 = sadd.s32 %s33, %s32
          %s604 = smul.addr %s31, 2
          %s605 = sadd.s32 %s603, %s604
          %s606 = smul.addr %s605, 128
          %s607 = scalar_lea.hbm %s3, %s606
          %s609 = sshll.u32 %s585, 4
          %s610 = int_to_ptr.vmem [resolvable:$true] %s609
          %612 = dma.vmem_to_hbm [thread:$0]  %s610, 128, %s607, %s582
        $region56: #{tpu_custom_call.1} parent=31 // pred_fallthru
          _
        // Predicated region
        $region57: #{tpu_custom_call.1} parent=31 // pred_check
          %p613 = pneg %p193
        $region58: #{tpu_custom_call.1} parent=31 // pred_check_branch
          %615 = sbr.rel (%p613) target = $region60
        $region59: #{tpu_custom_call.1} parent=31 // pred_region
          _
        $region60: #{tpu_custom_call.1} parent=31 // pred_fallthru
          _
      $region32: #{tpu_custom_call.1} parent=5 // pred_fallthru
        _
      %p616 = scmp.le.s32.totalorder 2, %s20
      // Predicated region
      $region61: #{tpu_custom_call.1} parent=5 // pred_check
        %p617 = pneg %p616
      $region62: #{tpu_custom_call.1} parent=5 // pred_check_branch
        %619 = sbr.rel (%p617) target = $region64
      $region63: #{tpu_custom_call.1} parent=5 // pred_region
        %s620 = ssub.s32 %s20, 2
        // Predicated region
        $region65: #{tpu_custom_call.1} parent=63 // pred_check
          %p621 = pneg %p169
        $region66: #{tpu_custom_call.1} parent=63 // pred_check_branch
          %623 = sbr.rel (%p621) target = $region68
        $region67: #{tpu_custom_call.1} parent=63 // pred_region
          %s624 = sand.u32 %s154, 1
          %s625 = scalar_lea.sflag [#allocation7], %s624
          %s626 = sand.u32 %s154, 1
          %s627 = smul.addr %s626, 8
          %s628 = scalar_lea.vmem [#allocation11], %s627
          %629 = dma.done %s625, 128
        $region68: #{tpu_custom_call.1} parent=63 // pred_fallthru
          _
        // Predicated region
        $region69: #{tpu_custom_call.1} parent=63 // pred_check
          %p630 = pneg %p199
        $region70: #{tpu_custom_call.1} parent=63 // pred_check_branch
          %632 = sbr.rel (%p630) target = $region72
        $region71: #{tpu_custom_call.1} parent=63 // pred_region
          %p633 = scmp.lt.s32.totalorder %s35, 1
          %s634 = scalar_select %p633, %s35, 1
          %p635 = scmp.lt.s32.totalorder %s36, 1
          %s636 = scalar_select %p635, %s36, 1
          %p637 = scmp.lt.s32.totalorder %s37, 0
          %s638 = scalar_select %p637, %s37, 0
          %s639 = sadd.s32 %s638, %s636
          %s640 = smul.addr %s634, 2
          %s641 = sadd.s32 %s639, %s640
          %s642 = smul.addr %s641, 8
          %s643 = scalar_lea.vmem %s4, %s642
        $region72: #{tpu_custom_call.1} parent=63 // pred_fallthru
          _
      $region64: #{tpu_custom_call.1} parent=5 // pred_fallthru
        _
    $region6: #{tpu_custom_call.1} parent=1 // loop_footer
      %s24 = sadd.s32 1, %s20
    $region7: #{tpu_custom_call.1} parent=1 // loop_footer_branch
      %19 = sbr.rel target = $region3
    $region8: #{tpu_custom_call.1} parent=1 // loop_exit
      _
    %644 = vsyncpa [#allocation6], 1
    %s645 = scalar_lea.sflag [#allocation6], 1
    %646 = vsyncpa %s645, 1
    %647 = vsyncpa [#allocation9], 1
    %s648 = scalar_lea.sflag [#allocation9], 1
    %649 = vsyncpa %s648, 1
    %650 = vsyncpa [#allocation7], 1
    %s651 = scalar_lea.sflag [#allocation7], 1
    %652 = vsyncpa %s651, 1

</llo_original>
